<compile_context>
chip_gen: v7x
topology: tpu7x:2x2x1
jax: 0.10.0
libtpu: 0.0.40
codegen_flags: <defaults>
</compile_context>

<pallas_src>
import functools

import jax
import jax.numpy as jnp
from jax import lax
from jax.experimental import pallas as pl
from jax.experimental.pallas import tpu as pltpu


def _round_up(x, m):
    return (x + m - 1) // m * m


def _resblock_kernel(x_ref, w1_ref, w2_ref, wres_ref, p_ref, o_ref, *,
                     K, pad, L, L_pad, NB, mm_dtype):
    # packed per-channel params, channels on sublanes: columns [s1, t1, s2, t2]
    s1 = p_ref[:, 0:1]                       # (C_out, 1)
    t1 = p_ref[:, 1:2]
    s2 = p_ref[:, 2:3]
    t2 = p_ref[:, 3:4]

    c_out = o_ref.shape[1]
    lane = lax.broadcasted_iota(jnp.int32, (c_out, L_pad), 1)
    valid = lane < L                         # real (unpadded) output lanes

    def taps(h):
        # Stack K shifted copies along the channel (sublane) axis -> (K*C, L_pad).
        # roll is circular; lanes [L, L_pad) hold zeros and L_pad >= L + pad,
        # so the wrapped-in values are exactly the conv's zero padding.
        cols = []
        for k in range(K):
            shift = (pad - k) % L_pad
            cols.append(h if shift == 0 else pltpu.roll(h, shift=shift, axis=1))
        return jnp.concatenate(cols, axis=0)

    for n in range(NB):                      # NB small & static -> unrolled
        x = x_ref[n]                         # (C_in, L_pad)
        xm = x.astype(mm_dtype)

        # ---- conv1 as a single im2col matmul + folded BN1 + ReLU ----
        a1 = jnp.dot(w1_ref[...], taps(xm),
                     preferred_element_type=jnp.float32)
        h1 = jnp.maximum(a1 * s1 + t1, 0.0)

        # TODO(synk): training-mode dropout (Bernoulli mask via pltpu.prng_*)
        # omitted; eval-mode (identity) semantics used.

        # zero the padded lanes so conv2's rolled taps see true zero padding
        h1 = jnp.where(valid, h1, 0.0).astype(mm_dtype)

        # ---- conv2 as a single im2col matmul + folded BN2 (+ residual bias) ----
        a2 = jnp.dot(w2_ref[...], taps(h1),
                     preferred_element_type=jnp.float32)
        h2 = a2 * s2 + t2

        # ---- residual 1x1 conv, add, ReLU ----
        ident = jnp.dot(wres_ref[...], xm, preferred_element_type=jnp.float32)
        o_ref[n] = jnp.maximum(h2 + ident, 0.0).astype(o_ref.dtype)


def residual_block(x, params, *, kernel_size=5, eps=1e-5, use_bf16_matmul=False):
    """x: (N, C_in, L) float32.  Returns (N, C_out, L) float32 (eval forward)."""
    N, c_in, L = x.shape
    K = kernel_size
    pad = K // 2
    c_out = params["w1"].shape[0]            # PyTorch Conv1d layout (C_out, C_in, K)

    # lane-dense layout: right-pad L up to a multiple of 128 and >= L + pad so
    # the circular roll only wraps into zero lanes.
    L_pad = _round_up(max(L + pad, 128), 128)
    xpad = jnp.pad(x, ((0, 0), (0, 0), (0, L_pad - L)))

    mm_dtype = jnp.bfloat16 if use_bf16_matmul else jnp.float32

    # ---- fold BN running stats + conv bias into per-channel scale/shift ----
    s1 = params["g1"] / jnp.sqrt(params["v1"] + eps)
    t1 = params["be1"] - params["m1"] * s1 + params["b1"] * s1
    s2 = params["g2"] / jnp.sqrt(params["v2"] + eps)
    t2 = params["be2"] - params["m2"] * s2 + params["b2"] * s2

    # residual 1x1 conv (identity if in_channels == out_channels)
    if params.get("wres") is None:
        wres = jnp.eye(c_out, c_in, dtype=x.dtype)
        bres = jnp.zeros((c_out,), x.dtype)
    else:
        wres = params["wres"]
        bres = params["bres"]
    t2 = t2 + bres                            # fold residual bias too

    packed = jnp.stack([s1, t1, s2, t2], axis=1).astype(jnp.float32)   # (C_out, 4)

    # im2col weight layout: row order = tap k major, input channel minor
    # (matches the tap stacking inside the kernel).
    w1_flat = jnp.transpose(params["w1"], (0, 2, 1)).reshape(c_out, K * c_in)
    w2_flat = jnp.transpose(params["w2"], (0, 2, 1)).reshape(c_out, K * c_out)
    w1_flat = w1_flat.astype(mm_dtype)
    w2_flat = w2_flat.astype(mm_dtype)
    wres = wres.astype(mm_dtype)

    # All batches in one grid step at these toy sizes; for large N/L add a
    # batch-tile and an L-tile grid axis (both "parallel") to feed both
    # TensorCores on v7x and amortize per-step overhead.
    NB = N
    kernel = functools.partial(_resblock_kernel, K=K, pad=pad, L=L,
                               L_pad=L_pad, NB=NB, mm_dtype=mm_dtype)

    out = pl.pallas_call(
        kernel,
        out_shape=jax.ShapeDtypeStruct((N, c_out, L_pad), x.dtype),
        grid_spec=pltpu.PrefetchScalarGridSpec(
            num_scalar_prefetch=0,
            grid=(N // NB,),
            in_specs=[
                pl.BlockSpec((NB, c_in, L_pad), lambda b: (b, 0, 0)),   # x (padded)
                pl.BlockSpec((c_out, K * c_in), lambda b: (0, 0)),      # w1 im2col
                pl.BlockSpec((c_out, K * c_out), lambda b: (0, 0)),     # w2 im2col
                pl.BlockSpec((c_out, c_in), lambda b: (0, 0)),          # wres (1x1)
                pl.BlockSpec((c_out, 4), lambda b: (0, 0)),             # packed BN/bias
            ],
            out_specs=pl.BlockSpec((NB, c_out, L_pad), lambda b: (b, 0, 0)),
        ),
        compiler_params=pltpu.CompilerParams(
            dimension_semantics=("parallel",)),
    )(xpad, w1_flat, w2_flat, wres, packed)

    return out[:, :, :L]


# --------------------------- pure-JAX reference ----------------------------
def reference_forward(x, params, *, kernel_size=5, eps=1e-5):
    pad = kernel_size // 2

    def conv1d(h, w_oik, b):
        y = lax.conv_general_dilated(
            h, w_oik, window_strides=(1,), padding=[(pad, pad)],
            dimension_numbers=("NCH", "OIH", "NCH"))
        return y + b[None, :, None]

    def bn(h, g, be, m, v):
        return (h - m[None, :, None]) / jnp.sqrt(v[None, :, None] + eps) \
               * g[None, :, None] + be[None, :, None]

    identity = jnp.einsum("oi,nil->nol", params["wres"], x) \
               + params["bres"][None, :, None]
    h = conv1d(x, params["w1"], params["b1"])
    h = jnp.maximum(bn(h, params["g1"], params["be1"], params["m1"], params["v1"]), 0.0)
    h = conv1d(h, params["w2"], params["b2"])
    h = bn(h, params["g2"], params["be2"], params["m2"], params["v2"])
    return jnp.maximum(h + identity, 0.0)


# --------------------------------- main -------------------------------------
if __name__ == "__main__":
    N, C_IN, C_OUT, L, K = 2, 4, 8, 16, 5

    key = jax.random.PRNGKey(0)
    ks = jax.random.split(key, 14)
    f32 = jnp.float32
    params = {
        # PyTorch Conv1d weight layout: (C_out, C_in, K)
        "w1":   jax.random.normal(ks[0], (C_OUT, C_IN, K), f32) * 0.2,
        "b1":   jax.random.normal(ks[1], (C_OUT,), f32) * 0.1,
        "g1":   1.0 + 0.1 * jax.random.normal(ks[2], (C_OUT,), f32),
        "be1":  0.1 * jax.random.normal(ks[3], (C_OUT,), f32),
        "m1":   0.1 * jax.random.normal(ks[4], (C_OUT,), f32),
        "v1":   1.0 + 0.1 * jax.random.uniform(ks[5], (C_OUT,), f32),
        "w2":   jax.random.normal(ks[6], (C_OUT, C_OUT, K), f32) * 0.2,
        "b2":   jax.random.normal(ks[7], (C_OUT,), f32) * 0.1,
        "g2":   1.0 + 0.1 * jax.random.normal(ks[8], (C_OUT,), f32),
        "be2":  0.1 * jax.random.normal(ks[9], (C_OUT,), f32),
        "m2":   0.1 * jax.random.normal(ks[10], (C_OUT,), f32),
        "v2":   1.0 + 0.1 * jax.random.uniform(ks[11], (C_OUT,), f32),
        "wres": jax.random.normal(ks[12], (C_OUT, C_IN), f32) * 0.3,
        "bres": jax.random.normal(ks[13], (C_OUT,), f32) * 0.1,
    }

    x = jax.random.normal(jax.random.PRNGKey(7), (N, C_IN, L), f32)

    out = jax.jit(lambda xx: residual_block(xx, params, kernel_size=K))(x)
    out = jax.block_until_ready(out)

    ref = reference_forward(x, params, kernel_size=K)
    assert out.shape == (N, C_OUT, L)
    assert jnp.allclose(out, ref, atol=1e-4, rtol=1e-4), "mismatch vs reference"

    print("KERNEL_OK")
</pallas_src>

<mosaic_0001>
module attributes {stable_mosaic.version = 11 : i64} {
  func.func @_resblock_kernel(%arg0: i32, %arg1: memref<2x4x128xf32, #tpu.memory_space<vmem>>, %arg2: memref<8x20xf32, #tpu.memory_space<vmem>>, %arg3: memref<8x40xf32, #tpu.memory_space<vmem>>, %arg4: memref<8x4xf32, #tpu.memory_space<vmem>>, %arg5: memref<8x4xf32, #tpu.memory_space<vmem>>, %arg6: memref<2x8x128xf32, #tpu.memory_space<vmem>>) attributes {dimension_semantics = [#tpu.dimension_semantics<parallel>], iteration_bounds = array<i64: 1>, scalar_prefetch = 0 : i64, scratch_operands = 0 : i64, tpu.core_type = #tpu.core_type<tc>, window_params = [{transform_indices = @transform_0, window_bounds = array<i64: 2, 4, 128>}, {pipeline_mode = #tpu.pipeline_mode<synchronous>, transform_indices = @transform_1, window_bounds = array<i64: 8, 20>}, {pipeline_mode = #tpu.pipeline_mode<synchronous>, transform_indices = @transform_2, window_bounds = array<i64: 8, 40>}, {pipeline_mode = #tpu.pipeline_mode<synchronous>, transform_indices = @transform_3, window_bounds = array<i64: 8, 4>}, {pipeline_mode = #tpu.pipeline_mode<synchronous>, transform_indices = @transform_4, window_bounds = array<i64: 8, 4>}, {transform_indices = @transform_5, window_bounds = array<i64: 2, 8, 128>}]} {
    %c0 = arith.constant 0 : index
    %c0_0 = arith.constant 0 : index
    %0 = vector.load %arg5[%c0, %c0_0] : memref<8x4xf32, #tpu.memory_space<vmem>>, vector<8x1xf32>
    %c0_1 = arith.constant 0 : index
    %c1 = arith.constant 1 : index
    %1 = vector.load %arg5[%c0_1, %c1] : memref<8x4xf32, #tpu.memory_space<vmem>>, vector<8x1xf32>
    %c0_2 = arith.constant 0 : index
    %c2 = arith.constant 2 : index
    %2 = vector.load %arg5[%c0_2, %c2] : memref<8x4xf32, #tpu.memory_space<vmem>>, vector<8x1xf32>
    %c0_3 = arith.constant 0 : index
    %c3 = arith.constant 3 : index
    %3 = vector.load %arg5[%c0_3, %c3] : memref<8x4xf32, #tpu.memory_space<vmem>>, vector<8x1xf32>
    %4 = tpu.iota {dimensions = array<i32: 1>} : vector<8x128xi32>
    %c16_i32 = arith.constant 16 : i32
    %5 = vector.broadcast %c16_i32 : i32 to vector<8x128xi32>
    %6 = arith.cmpi slt, %4, %5 : vector<8x128xi32>
    %c0_4 = arith.constant 0 : index
    %c0_5 = arith.constant 0 : index
    %c0_6 = arith.constant 0 : index
    %7 = vector.load %arg1[%c0_4, %c0_5, %c0_6] : memref<2x4x128xf32, #tpu.memory_space<vmem>>, vector<1x4x128xf32>
    %8 = vector.shape_cast %7 : vector<1x4x128xf32> to vector<4x128xf32>
    %c0_7 = arith.constant 0 : index
    %c0_8 = arith.constant 0 : index
    %9 = vector.load %arg2[%c0_7, %c0_8] : memref<8x20xf32, #tpu.memory_space<vmem>>, vector<8x20xf32>
    %c2_i32 = arith.constant 2 : i32
    %10 = tpu.dynamic_rotate %8 by %c2_i32 dim 1 : vector<4x128xf32>, i32 -> vector<4x128xf32>
    %c1_i32 = arith.constant 1 : i32
    %11 = tpu.dynamic_rotate %8 by %c1_i32 dim 1 : vector<4x128xf32>, i32 -> vector<4x128xf32>
    %c127_i32 = arith.constant 127 : i32
    %12 = tpu.dynamic_rotate %8 by %c127_i32 dim 1 : vector<4x128xf32>, i32 -> vector<4x128xf32>
    %c126_i32 = arith.constant 126 : i32
    %13 = tpu.dynamic_rotate %8 by %c126_i32 dim 1 : vector<4x128xf32>, i32 -> vector<4x128xf32>
    %14 = tpu.concatenate %10, %11, %8, %12, %13 in 0 : vector<4x128xf32>, vector<4x128xf32>, vector<4x128xf32>, vector<4x128xf32>, vector<4x128xf32> -> vector<20x128xf32>
    %cst = arith.constant dense<0.000000e+00> : vector<8x128xf32>
    %15 = tpu.matmul %9, %14, %cst {dimension_numbers = #tpu.dot_dimension_numbers<[1], [0], [0], [1], [0, 0, 1, 1], [], []>} : vector<8x20xf32>, vector<20x128xf32>, vector<8x128xf32> -> vector<8x128xf32>
    %16 = vector.broadcast %0 : vector<8x1xf32> to vector<8x128xf32>
    %17 = arith.mulf %15, %16 : vector<8x128xf32>
    %18 = vector.broadcast %1 : vector<8x1xf32> to vector<8x128xf32>
    %19 = arith.addf %17, %18 : vector<8x128xf32>
    %cst_9 = arith.constant 0.000000e+00 : f32
    %20 = vector.broadcast %cst_9 : f32 to vector<8x128xf32>
    %21 = arith.maximumf %19, %20 : vector<8x128xf32>
    %cst_10 = arith.constant 0.000000e+00 : f32
    %22 = vector.broadcast %cst_10 : f32 to vector<8x128xf32>
    %23 = arith.select %6, %21, %22 : vector<8x128xi1>, vector<8x128xf32>
    %c0_11 = arith.constant 0 : index
    %c0_12 = arith.constant 0 : index
    %24 = vector.load %arg3[%c0_11, %c0_12] : memref<8x40xf32, #tpu.memory_space<vmem>>, vector<8x40xf32>
    %c2_i32_13 = arith.constant 2 : i32
    %25 = tpu.dynamic_rotate %23 by %c2_i32_13 dim 1 : vector<8x128xf32>, i32 -> vector<8x128xf32>
    %c1_i32_14 = arith.constant 1 : i32
    %26 = tpu.dynamic_rotate %23 by %c1_i32_14 dim 1 : vector<8x128xf32>, i32 -> vector<8x128xf32>
    %c127_i32_15 = arith.constant 127 : i32
    %27 = tpu.dynamic_rotate %23 by %c127_i32_15 dim 1 : vector<8x128xf32>, i32 -> vector<8x128xf32>
    %c126_i32_16 = arith.constant 126 : i32
    %28 = tpu.dynamic_rotate %23 by %c126_i32_16 dim 1 : vector<8x128xf32>, i32 -> vector<8x128xf32>
    %29 = tpu.concatenate %25, %26, %23, %27, %28 in 0 : vector<8x128xf32>, vector<8x128xf32>, vector<8x128xf32>, vector<8x128xf32>, vector<8x128xf32> -> vector<40x128xf32>
    %cst_17 = arith.constant dense<0.000000e+00> : vector<8x128xf32>
    %30 = tpu.matmul %24, %29, %cst_17 {dimension_numbers = #tpu.dot_dimension_numbers<[1], [0], [0], [1], [0, 0, 1, 1], [], []>} : vector<8x40xf32>, vector<40x128xf32>, vector<8x128xf32> -> vector<8x128xf32>
    %31 = vector.broadcast %2 : vector<8x1xf32> to vector<8x128xf32>
    %32 = arith.mulf %30, %31 : vector<8x128xf32>
    %33 = vector.broadcast %3 : vector<8x1xf32> to vector<8x128xf32>
    %34 = arith.addf %32, %33 : vector<8x128xf32>
    %c0_18 = arith.constant 0 : index
    %c0_19 = arith.constant 0 : index
    %35 = vector.load %arg4[%c0_18, %c0_19] : memref<8x4xf32, #tpu.memory_space<vmem>>, vector<8x4xf32>
    %cst_20 = arith.constant dense<0.000000e+00> : vector<8x128xf32>
    %36 = tpu.matmul %35, %8, %cst_20 {dimension_numbers = #tpu.dot_dimension_numbers<[1], [0], [0], [1], [0, 0, 1, 1], [], []>} : vector<8x4xf32>, vector<4x128xf32>, vector<8x128xf32> -> vector<8x128xf32>
    %37 = arith.addf %34, %36 : vector<8x128xf32>
    %cst_21 = arith.constant 0.000000e+00 : f32
    %38 = vector.broadcast %cst_21 : f32 to vector<8x128xf32>
    %39 = arith.maximumf %37, %38 : vector<8x128xf32>
    %c0_22 = arith.constant 0 : index
    %c0_23 = arith.constant 0 : index
    %c0_24 = arith.constant 0 : index
    %40 = vector.load %arg6[%c0_22, %c0_23, %c0_24] : memref<2x8x128xf32, #tpu.memory_space<vmem>>, vector<1x8x128xf32>
    %41 = vector.shape_cast %40 : vector<1x8x128xf32> to vector<8x128xf32>
    %42 = vector.shape_cast %39 : vector<8x128xf32> to vector<1x8x128xf32>
    tpu.vector_store %arg6[%c0_22, %c0_23, %c0_24], %42 {strides = array<i32>} : memref<2x8x128xf32, #tpu.memory_space<vmem>>, vector<1x8x128xf32>,
    %c1_25 = arith.constant 1 : index
    %c0_26 = arith.constant 0 : index
    %c0_27 = arith.constant 0 : index
    %43 = vector.load %arg1[%c1_25, %c0_26, %c0_27] : memref<2x4x128xf32, #tpu.memory_space<vmem>>, vector<1x4x128xf32>
    %44 = vector.shape_cast %43 : vector<1x4x128xf32> to vector<4x128xf32>
    %c0_28 = arith.constant 0 : index
    %c0_29 = arith.constant 0 : index
    %45 = vector.load %arg2[%c0_28, %c0_29] : memref<8x20xf32, #tpu.memory_space<vmem>>, vector<8x20xf32>
    %c2_i32_30 = arith.constant 2 : i32
    %46 = tpu.dynamic_rotate %44 by %c2_i32_30 dim 1 : vector<4x128xf32>, i32 -> vector<4x128xf32>
    %c1_i32_31 = arith.constant 1 : i32
    %47 = tpu.dynamic_rotate %44 by %c1_i32_31 dim 1 : vector<4x128xf32>, i32 -> vector<4x128xf32>
    %c127_i32_32 = arith.constant 127 : i32
    %48 = tpu.dynamic_rotate %44 by %c127_i32_32 dim 1 : vector<4x128xf32>, i32 -> vector<4x128xf32>
    %c126_i32_33 = arith.constant 126 : i32
    %49 = tpu.dynamic_rotate %44 by %c126_i32_33 dim 1 : vector<4x128xf32>, i32 -> vector<4x128xf32>
    %50 = tpu.concatenate %46, %47, %44, %48, %49 in 0 : vector<4x128xf32>, vector<4x128xf32>, vector<4x128xf32>, vector<4x128xf32>, vector<4x128xf32> -> vector<20x128xf32>
    %cst_34 = arith.constant dense<0.000000e+00> : vector<8x128xf32>
    %51 = tpu.matmul %45, %50, %cst_34 {dimension_numbers = #tpu.dot_dimension_numbers<[1], [0], [0], [1], [0, 0, 1, 1], [], []>} : vector<8x20xf32>, vector<20x128xf32>, vector<8x128xf32> -> vector<8x128xf32>
    %52 = vector.broadcast %0 : vector<8x1xf32> to vector<8x128xf32>
    %53 = arith.mulf %51, %52 : vector<8x128xf32>
    %54 = vector.broadcast %1 : vector<8x1xf32> to vector<8x128xf32>
    %55 = arith.addf %53, %54 : vector<8x128xf32>
    %cst_35 = arith.constant 0.000000e+00 : f32
    %56 = vector.broadcast %cst_35 : f32 to vector<8x128xf32>
    %57 = arith.maximumf %55, %56 : vector<8x128xf32>
    %cst_36 = arith.constant 0.000000e+00 : f32
    %58 = vector.broadcast %cst_36 : f32 to vector<8x128xf32>
    %59 = arith.select %6, %57, %58 : vector<8x128xi1>, vector<8x128xf32>
    %c0_37 = arith.constant 0 : index
    %c0_38 = arith.constant 0 : index
    %60 = vector.load %arg3[%c0_37, %c0_38] : memref<8x40xf32, #tpu.memory_space<vmem>>, vector<8x40xf32>
    %c2_i32_39 = arith.constant 2 : i32
    %61 = tpu.dynamic_rotate %59 by %c2_i32_39 dim 1 : vector<8x128xf32>, i32 -> vector<8x128xf32>
    %c1_i32_40 = arith.constant 1 : i32
    %62 = tpu.dynamic_rotate %59 by %c1_i32_40 dim 1 : vector<8x128xf32>, i32 -> vector<8x128xf32>
    %c127_i32_41 = arith.constant 127 : i32
    %63 = tpu.dynamic_rotate %59 by %c127_i32_41 dim 1 : vector<8x128xf32>, i32 -> vector<8x128xf32>
    %c126_i32_42 = arith.constant 126 : i32
    %64 = tpu.dynamic_rotate %59 by %c126_i32_42 dim 1 : vector<8x128xf32>, i32 -> vector<8x128xf32>
    %65 = tpu.concatenate %61, %62, %59, %63, %64 in 0 : vector<8x128xf32>, vector<8x128xf32>, vector<8x128xf32>, vector<8x128xf32>, vector<8x128xf32> -> vector<40x128xf32>
    %cst_43 = arith.constant dense<0.000000e+00> : vector<8x128xf32>
    %66 = tpu.matmul %60, %65, %cst_43 {dimension_numbers = #tpu.dot_dimension_numbers<[1], [0], [0], [1], [0, 0, 1, 1], [], []>} : vector<8x40xf32>, vector<40x128xf32>, vector<8x128xf32> -> vector<8x128xf32>
    %67 = vector.broadcast %2 : vector<8x1xf32> to vector<8x128xf32>
    %68 = arith.mulf %66, %67 : vector<8x128xf32>
    %69 = vector.broadcast %3 : vector<8x1xf32> to vector<8x128xf32>
    %70 = arith.addf %68, %69 : vector<8x128xf32>
    %c0_44 = arith.constant 0 : index
    %c0_45 = arith.constant 0 : index
    %71 = vector.load %arg4[%c0_44, %c0_45] : memref<8x4xf32, #tpu.memory_space<vmem>>, vector<8x4xf32>
    %cst_46 = arith.constant dense<0.000000e+00> : vector<8x128xf32>
    %72 = tpu.matmul %71, %44, %cst_46 {dimension_numbers = #tpu.dot_dimension_numbers<[1], [0], [0], [1], [0, 0, 1, 1], [], []>} : vector<8x4xf32>, vector<4x128xf32>, vector<8x128xf32> -> vector<8x128xf32>
    %73 = arith.addf %70, %72 : vector<8x128xf32>
    %cst_47 = arith.constant 0.000000e+00 : f32
    %74 = vector.broadcast %cst_47 : f32 to vector<8x128xf32>
    %75 = arith.maximumf %73, %74 : vector<8x128xf32>
    %c1_48 = arith.constant 1 : index
    %c0_49 = arith.constant 0 : index
    %c0_50 = arith.constant 0 : index
    %76 = vector.load %arg6[%c1_48, %c0_49, %c0_50] : memref<2x8x128xf32, #tpu.memory_space<vmem>>, vector<1x8x128xf32>
    %77 = vector.shape_cast %76 : vector<1x8x128xf32> to vector<8x128xf32>
    %78 = vector.shape_cast %75 : vector<8x128xf32> to vector<1x8x128xf32>
    tpu.vector_store %arg6[%c1_48, %c0_49, %c0_50], %78 {strides = array<i32>} : memref<2x8x128xf32, #tpu.memory_space<vmem>>, vector<1x8x128xf32>,
    return
  }
  func.func @transform_0(%arg0: i32) -> (i32, i32, i32) {
    %c0_i32 = arith.constant 0 : i32
    %c0_i32_0 = arith.constant 0 : i32
    %c0_i32_1 = arith.constant 0 : i32
    return %arg0, %c0_i32, %c0_i32_0 : i32, i32, i32
  }
  func.func @transform_1(%arg0: i32) -> (i32, i32) {
    %c0_i32 = arith.constant 0 : i32
    %c0_i32_0 = arith.constant 0 : i32
    %c0_i32_1 = arith.constant 0 : i32
    return %c0_i32, %c0_i32_0 : i32, i32
  }
  func.func @transform_2(%arg0: i32) -> (i32, i32) {
    %c0_i32 = arith.constant 0 : i32
    %c0_i32_0 = arith.constant 0 : i32
    %c0_i32_1 = arith.constant 0 : i32
    return %c0_i32, %c0_i32_0 : i32, i32
  }
  func.func @transform_3(%arg0: i32) -> (i32, i32) {
    %c0_i32 = arith.constant 0 : i32
    %c0_i32_0 = arith.constant 0 : i32
    %c0_i32_1 = arith.constant 0 : i32
    return %c0_i32, %c0_i32_0 : i32, i32
  }
  func.func @transform_4(%arg0: i32) -> (i32, i32) {
    %c0_i32 = arith.constant 0 : i32
    %c0_i32_0 = arith.constant 0 : i32
    %c0_i32_1 = arith.constant 0 : i32
    return %c0_i32, %c0_i32_0 : i32, i32
  }
  func.func @transform_5(%arg0: i32) -> (i32, i32, i32) {
    %c0_i32 = arith.constant 0 : i32
    %c0_i32_0 = arith.constant 0 : i32
    %c0_i32_1 = arith.constant 0 : i32
    return %arg0, %c0_i32, %c0_i32_0 : i32, i32, i32
  }
}

</mosaic_0001>

<llo_original>
// kernel: _lambda_.1
$region0: #{_lambda_.1}
  #allocation0 [shape = 'u32[]', space=smem, size = 0x4, offset = 0x4, fixed_abs, tag = 'smem constant byte address 0x4 - core index']
  #allocation1 [shape = 'u32[144,128]{1,0:T(1,128)}', space=vmem, size = 0x12000, scoped, tag = 'internal scratch']
  %s0 = inlined_call_operand.vmem [shape: f32[2,4,128], index: 0, kind: input, shape index: {}]
  %s1 = inlined_call_operand.vmem [shape: f32[8,20], index: 1, kind: input, shape index: {}]
  %s2 = inlined_call_operand.hbm [shape: f32[8,40], index: 2, kind: input, shape index: {}]
  %s3 = inlined_call_operand.vmem [shape: f32[8,4], index: 3, kind: input, shape index: {}]
  %s4 = inlined_call_operand.vmem [shape: f32[8,4], index: 4, kind: input, shape index: {}]
  %s5 = inlined_call_operand.hbm [shape: f32[2,8,128], index: 5, kind: output, shape index: {}]
  %s6 = sld [smem:[#allocation0]]
  $region34: #{_lambda_.1} parent=0
    _
  %s8 = ssub.s32 1, %s6
  %s9 = scalar_select 0, %s8, %s6
  $region1: #{_lambda_.1} parent=0
    #allocation2 [shape = 'u8[4096]{0}', space=vmem, size = 0x1000, scoped, tag = 'input window, operand 2, single buffered']
    #allocation3 [shape = 's32[1]{0}', space=sflag, size = 0x4, scoped, tag = 'scoped memory for _lambda_.1']
    #allocation4 [shape = 's32[1]{0}', space=sflag, size = 0x4, scoped, tag = 'scoped memory for _lambda_.1']
    #allocation5 [shape = 'u8[8192]{0}', space=vmem, size = 0x2000, scoped, tag = 'output window, operand 0, single buffered']
    %10 = vsyncpa [#allocation3], 0
    %11 = vsyncpa [#allocation4], 0
    // Predicated region
    $region2: #{_lambda_.1} parent=1 // pred_check
      _
    $region3: #{_lambda_.1} parent=1 // pred_check_branch
      %13 = sbr.rel (0) target = $region5
    $region4: #{_lambda_.1} parent=1 // pred_region
      _
    $region5: #{_lambda_.1} parent=1 // pred_fallthru
      _
    // Predicated region
    $region6: #{_lambda_.1} parent=1 // pred_check
      _
    $region7: #{_lambda_.1} parent=1 // pred_check_branch
      %15 = sbr.rel (0) target = $region9
    $region8: #{_lambda_.1} parent=1 // pred_region
      _
    $region9: #{_lambda_.1} parent=1 // pred_fallthru
      _
    // Predicated region
    $region10: #{_lambda_.1} parent=1 // pred_check
      _
    $region11: #{_lambda_.1} parent=1 // pred_check_branch
      %17 = sbr.rel (0) target = $region13
    $region12: #{_lambda_.1} parent=1 // pred_region
      %s19 = ssub.s32 128, 128
      %20 = vsyncadd [#allocation3], %s19
      %s22 = sshll.u32 [#allocation2], 4
      %s23 = int_to_ptr.vmem [resolvable:$true] %s22
      %25 = dma.hbm_to_vmem [thread:$0]  %s2, 128, %s23, [#allocation3]
    $region13: #{_lambda_.1} parent=1 // pred_fallthru
      _
    // Predicated region
    $region14: #{_lambda_.1} parent=1 // pred_check
      _
    $region15: #{_lambda_.1} parent=1 // pred_check_branch
      %27 = sbr.rel (0) target = $region17
    $region16: #{_lambda_.1} parent=1 // pred_region
      _
    $region17: #{_lambda_.1} parent=1 // pred_fallthru
      _
    // Predicated region
    $region18: #{_lambda_.1} parent=1 // pred_check
      _
    $region19: #{_lambda_.1} parent=1 // pred_check_branch
      %29 = sbr.rel (0) target = $region21
    $region20: #{_lambda_.1} parent=1 // pred_region
      _
    $region21: #{_lambda_.1} parent=1 // pred_fallthru
      _
    // Predicated region
    $region22: #{_lambda_.1} parent=1 // pred_check
      _
    $region23: #{_lambda_.1} parent=1 // pred_check_branch
      %31 = sbr.rel (0) target = $region25
    $region24: #{_lambda_.1} parent=1 // pred_region
      %32 = dma.done [#allocation3], 128
    $region25: #{_lambda_.1} parent=1 // pred_fallthru
      _
    %v33 = vld [vmem:[%s4] sm:$0xff]
    %v34 = vlaneseq
    %v35 = vand.u32 %v34, 127
    %vm36 = vcmp.lt.s32.totalorder %v35, 16
    %v37 = vld [vmem:[%s0] sm:$0xf]
    %v38 = vld [vmem:[%s1] sm:$0xff]
    %39 = vrot.lane.b32.xlu0 %v37, 2
    %v40 = vpop.permute.xlu0 %39
    %41 = vrot.lane.b32.xlu0 %v37, 1
    %v42 = vpop.permute.xlu0 %41
    %43 = vrot.lane.b32.xlu0 %v37, 127
    %v44 = vpop.permute.xlu0 %43
    %45 = vrot.lane.b32.xlu0 %v37, 126
    %v46 = vpop.permute.xlu0 %45
    %v48 = vrot.slane %v42, 4
    %v51 = vrot.slane %v44, 4
    %vm53 = vcmask 1043456
    %v54 = vsel %vm53, %v40, %v48
    %v55 = vsel %vm53, %v37, %v51
    %vm56 = vcmask 162816
    %v58 = vsel %vm56, %v38, 0
    %v61 = vsel %vm53, %v46, 0
    %63 = vmatprep.subr.mxu0 0.0
    %64 = vmatpush1.msra.mxu0 %v54
    %65 = vmatprep.subr.mxu0 0.0
    %66 = vmatpush1.msra.mxu0 %v55
    %67 = vmatprep.subr.mxu0 0.0
    %68 = vmatpush1.msra.mxu0 %v61
    %69 = vmatprep.subr.mxu0 0.0
    %70 = vmatpush1.msra.mxu0 0.0
    %71 = vmatprep.subr.mxu0 0.0
    %72 = vmatpush1.msra.mxu0 0.0
    %73 = vmatprep.subr.mxu0 0.0
    %74 = vmatpush1.msra.mxu0 0.0
    %75 = vmatprep.subr.mxu0 0.0
    %76 = vmatpush1.msra.mxu0 0.0
    %77 = vmatprep.subr.mxu0 0.0
    %78 = vmatpush1.msra.mxu0 0.0
    %79 = vmatprep.subr.mxu0 0.0
    %80 = vmatpush1.msra.mxu0 0.0
    %81 = vmatprep.subr.mxu0 0.0
    %82 = vmatpush1.msra.mxu0 0.0
    %83 = vmatprep.subr.mxu0 0.0
    %84 = vmatpush1.msra.mxu0 0.0
    %85 = vmatprep.subr.mxu0 0.0
    %86 = vmatpush1.msra.mxu0 0.0
    %87 = vmatprep.subr.mxu0 0.0
    %88 = vmatpush1.msra.mxu0 0.0
    %89 = vmatprep.subr.mxu0 0.0
    %90 = vmatpush1.msra.mxu0 0.0
    %91 = vmatprep.subr.mxu0 0.0
    %92 = vmatpush1.msra.mxu0 0.0
    %93 = vmatprep.subr.mxu0 0.0
    %94 = vmatpush1.msra.mxu0 0.0
    %95 = vmatprep.subr.mxu0 0.0
    %96 = vmatpush1.msra.mxu0 0.0
    %97 = vmatprep.subr.mxu0 0.0
    %98 = vmatpush1.msra.mxu0 0.0
    %99 = vmatprep.subr.mxu0 0.0
    %100 = vmatpush1.msra.mxu0 0.0
    %101 = vmatprep.subr.mxu0 0.0
    %102 = vmatpush1.msra.mxu0 0.0
    %103 = vmatprep.subr.mxu0 0.0
    %104 = vmatpush1.msra.mxu0 0.0
    %105 = vmatprep.subr.mxu0 0.0
    %106 = vmatpush1.msra.mxu0 0.0
    %107 = vmatprep.subr.mxu0 0.0
    %108 = vmatpush1.msra.mxu0 0.0
    %109 = vmatprep.subr.mxu0 0.0
    %110 = vmatpush1.msra.mxu0 0.0
    %111 = vmatprep.subr.mxu0 0.0
    %112 = vmatpush1.msra.mxu0 0.0
    %113 = vmatprep.subr.mxu0 0.0
    %114 = vmatpush1.msra.mxu0 0.0
    %115 = vmatprep.subr.mxu0 0.0
    %116 = vmatpush1.msra.mxu0 0.0
    %117 = vmatprep.subr.mxu0 0.0
    %118 = vmatpush1.msra.mxu0 0.0
    %119 = vmatprep.subr.mxu0 0.0
    %120 = vmatpush1.msra.mxu0 0.0
    %121 = vmatprep.subr.mxu0 0.0
    %122 = vmatpush1.msra.mxu0 0.0
    %123 = vmatprep.subr.mxu0 0.0
    %124 = vmatpush1.msra.mxu0 0.0
    %125 = vmatprep.subr.mxu0 0.0
    %126 = vmatpush1.msra.mxu0 0.0
    %127 = vmatprep.mubr.f32.mxu0 0.0
    %128 = vmatmul.mubr.f32.gmra.mrb[0].mxu0 %v58
    %v129 = vpop.f32.mrb[0].mxu0
    %v130 = vadd.f32 0.0, %v129
    %v131 = vpop.f32.mrb[0].mxu0
    %132 = vdwg.mxu0
    %134 = vset.pattern.permute.xlu0 0
    %135 = vperm.xlu0 %134, %v33
    %v136 = vpop.permute.xlu0 %135
    %v138 = vmul.f32 %v130, %v136
    %139 = vset.pattern.permute.xlu0 1
    %140 = vperm.xlu0 %139, %v33
    %v141 = vpop.permute.xlu0 %140
    %v143 = vadd.f32 %v138, %v141
    %v144 = vmax.f32 %v143, 0.0
    %v145 = vsel %vm36, %v144, 0.0
    %v146 = vld [vmem:[#allocation2] sm:$0xff]
    %147 = vrot.lane.b32.xlu0 %v145, 2
    %v148 = vpop.permute.xlu0 %147
    %149 = vrot.lane.b32.xlu0 %v145, 1
    %v150 = vpop.permute.xlu0 %149
    %151 = vrot.lane.b32.xlu0 %v145, 127
    %v152 = vpop.permute.xlu0 %151
    %153 = vrot.lane.b32.xlu0 %v145, 126
    %v154 = vpop.permute.xlu0 %153
    %vm155 = vcmask 326656
    %v157 = vsel %vm155, %v146, 0
    %159 = vmatprep.subr.mxu0 0.0
    %160 = vmatpush1.msra.mxu0 %v148
    %161 = vmatprep.subr.mxu0 0.0
    %162 = vmatpush1.msra.mxu0 %v150
    %163 = vmatprep.subr.mxu0 0.0
    %164 = vmatpush1.msra.mxu0 %v145
    %165 = vmatprep.subr.mxu0 0.0
    %166 = vmatpush1.msra.mxu0 %v152
    %167 = vmatprep.subr.mxu0 0.0
    %168 = vmatpush1.msra.mxu0 %v154
    %169 = vmatprep.subr.mxu0 0.0
    %170 = vmatpush1.msra.mxu0 0.0
    %171 = vmatprep.subr.mxu0 0.0
    %172 = vmatpush1.msra.mxu0 0.0
    %173 = vmatprep.subr.mxu0 0.0
    %174 = vmatpush1.msra.mxu0 0.0
    %175 = vmatprep.subr.mxu0 0.0
    %176 = vmatpush1.msra.mxu0 0.0
    %177 = vmatprep.subr.mxu0 0.0
    %178 = vmatpush1.msra.mxu0 0.0
    %179 = vmatprep.subr.mxu0 0.0
    %180 = vmatpush1.msra.mxu0 0.0
    %181 = vmatprep.subr.mxu0 0.0
    %182 = vmatpush1.msra.mxu0 0.0
    %183 = vmatprep.subr.mxu0 0.0
    %184 = vmatpush1.msra.mxu0 0.0
    %185 = vmatprep.subr.mxu0 0.0
    %186 = vmatpush1.msra.mxu0 0.0
    %187 = vmatprep.subr.mxu0 0.0
    %188 = vmatpush1.msra.mxu0 0.0
    %189 = vmatprep.subr.mxu0 0.0
    %190 = vmatpush1.msra.mxu0 0.0
    %191 = vmatprep.subr.mxu0 0.0
    %192 = vmatpush1.msra.mxu0 0.0
    %193 = vmatprep.subr.mxu0 0.0
    %194 = vmatpush1.msra.mxu0 0.0
    %195 = vmatprep.subr.mxu0 0.0
    %196 = vmatpush1.msra.mxu0 0.0
    %197 = vmatprep.subr.mxu0 0.0
    %198 = vmatpush1.msra.mxu0 0.0
    %199 = vmatprep.subr.mxu0 0.0
    %200 = vmatpush1.msra.mxu0 0.0
    %201 = vmatprep.subr.mxu0 0.0
    %202 = vmatpush1.msra.mxu0 0.0
    %203 = vmatprep.subr.mxu0 0.0
    %204 = vmatpush1.msra.mxu0 0.0
    %205 = vmatprep.subr.mxu0 0.0
    %206 = vmatpush1.msra.mxu0 0.0
    %207 = vmatprep.subr.mxu0 0.0
    %208 = vmatpush1.msra.mxu0 0.0
    %209 = vmatprep.subr.mxu0 0.0
    %210 = vmatpush1.msra.mxu0 0.0
    %211 = vmatprep.subr.mxu0 0.0
    %212 = vmatpush1.msra.mxu0 0.0
    %213 = vmatprep.subr.mxu0 0.0
    %214 = vmatpush1.msra.mxu0 0.0
    %215 = vmatprep.subr.mxu0 0.0
    %216 = vmatpush1.msra.mxu0 0.0
    %217 = vmatprep.subr.mxu0 0.0
    %218 = vmatpush1.msra.mxu0 0.0
    %219 = vmatprep.subr.mxu0 0.0
    %220 = vmatpush1.msra.mxu0 0.0
    %221 = vmatprep.subr.mxu0 0.0
    %222 = vmatpush1.msra.mxu0 0.0
    %223 = vmatprep.mubr.f32.mxu0 0.0
    %224 = vmatmul.mubr.f32.gmra.mrb[0].mxu0 %v157
    %v225 = vpop.f32.mrb[0].mxu0
    %v226 = vadd.f32 0.0, %v225
    %v227 = vpop.f32.mrb[0].mxu0
    %228 = vdwg.mxu0
    %229 = vset.pattern.permute.xlu0 2
    %230 = vperm.xlu0 %229, %v33
    %v231 = vpop.permute.xlu0 %230
    %v233 = vmul.f32 %v226, %v231
    %234 = vset.pattern.permute.xlu0 3
    %235 = vperm.xlu0 %234, %v33
    %v236 = vpop.permute.xlu0 %235
    %v238 = vadd.f32 %v233, %v236
    %v239 = vld [vmem:[%s3] sm:$0xff]
    %vm240 = vcmask 31744
    %v242 = vsel %vm240, %v239, 0
    %v245 = vsel %vm53, %v37, 0
    %247 = vmatprep.subr.mxu0 0.0
    %248 = vmatpush1.msra.mxu0 %v245
    %249 = vmatprep.subr.mxu0 0.0
    %250 = vmatpush1.msra.mxu0 0.0
    %251 = vmatprep.subr.mxu0 0.0
    %252 = vmatpush1.msra.mxu0 0.0
    %253 = vmatprep.subr.mxu0 0.0
    %254 = vmatpush1.msra.mxu0 0.0
    %255 = vmatprep.subr.mxu0 0.0
    %256 = vmatpush1.msra.mxu0 0.0
    %257 = vmatprep.subr.mxu0 0.0
    %258 = vmatpush1.msra.mxu0 0.0
    %259 = vmatprep.subr.mxu0 0.0
    %260 = vmatpush1.msra.mxu0 0.0
    %261 = vmatprep.subr.mxu0 0.0
    %262 = vmatpush1.msra.mxu0 0.0
    %263 = vmatprep.subr.mxu0 0.0
    %264 = vmatpush1.msra.mxu0 0.0
    %265 = vmatprep.subr.mxu0 0.0
    %266 = vmatpush1.msra.mxu0 0.0
    %267 = vmatprep.subr.mxu0 0.0
    %268 = vmatpush1.msra.mxu0 0.0
    %269 = vmatprep.subr.mxu0 0.0
    %270 = vmatpush1.msra.mxu0 0.0
    %271 = vmatprep.subr.mxu0 0.0
    %272 = vmatpush1.msra.mxu0 0.0
    %273 = vmatprep.subr.mxu0 0.0
    %274 = vmatpush1.msra.mxu0 0.0
    %275 = vmatprep.subr.mxu0 0.0
    %276 = vmatpush1.msra.mxu0 0.0
    %277 = vmatprep.subr.mxu0 0.0
    %278 = vmatpush1.msra.mxu0 0.0
    %279 = vmatprep.subr.mxu0 0.0
    %280 = vmatpush1.msra.mxu0 0.0
    %281 = vmatprep.subr.mxu0 0.0
    %282 = vmatpush1.msra.mxu0 0.0
    %283 = vmatprep.subr.mxu0 0.0
    %284 = vmatpush1.msra.mxu0 0.0
    %285 = vmatprep.subr.mxu0 0.0
    %286 = vmatpush1.msra.mxu0 0.0
    %287 = vmatprep.subr.mxu0 0.0
    %288 = vmatpush1.msra.mxu0 0.0
    %289 = vmatprep.subr.mxu0 0.0
    %290 = vmatpush1.msra.mxu0 0.0
    %291 = vmatprep.subr.mxu0 0.0
    %292 = vmatpush1.msra.mxu0 0.0
    %293 = vmatprep.subr.mxu0 0.0
    %294 = vmatpush1.msra.mxu0 0.0
    %295 = vmatprep.subr.mxu0 0.0
    %296 = vmatpush1.msra.mxu0 0.0
    %297 = vmatprep.subr.mxu0 0.0
    %298 = vmatpush1.msra.mxu0 0.0
    %299 = vmatprep.subr.mxu0 0.0
    %300 = vmatpush1.msra.mxu0 0.0
    %301 = vmatprep.subr.mxu0 0.0
    %302 = vmatpush1.msra.mxu0 0.0
    %303 = vmatprep.subr.mxu0 0.0
    %304 = vmatpush1.msra.mxu0 0.0
    %305 = vmatprep.subr.mxu0 0.0
    %306 = vmatpush1.msra.mxu0 0.0
    %307 = vmatprep.subr.mxu0 0.0
    %308 = vmatpush1.msra.mxu0 0.0
    %309 = vmatprep.subr.mxu0 0.0
    %310 = vmatpush1.msra.mxu0 0.0
    %311 = vmatprep.mubr.f32.mxu0 0.0
    %312 = vmatmul.mubr.f32.gmra.mrb[0].mxu0 %v242
    %v313 = vpop.f32.mrb[0].mxu0
    %v314 = vadd.f32 0.0, %v313
    %v315 = vpop.f32.mrb[0].mxu0
    %316 = vdwg.mxu0
    %v317 = vadd.f32 %v238, %v314
    %v318 = vmax.f32 %v317, 0.0
    %319 = vst [vmem:[#allocation5] sm:$0xff] %v318
    %s320 = scalar_lea.vmem %s0, 4
    %v321 = vld [vmem:[%s320] sm:$0xf]
    %v322 = vld [vmem:[%s1] sm:$0xff]
    %323 = vrot.lane.b32.xlu0 %v321, 2
    %v324 = vpop.permute.xlu0 %323
    %325 = vrot.lane.b32.xlu0 %v321, 1
    %v326 = vpop.permute.xlu0 %325
    %327 = vrot.lane.b32.xlu0 %v321, 127
    %v328 = vpop.permute.xlu0 %327
    %329 = vrot.lane.b32.xlu0 %v321, 126
    %v330 = vpop.permute.xlu0 %329
    %v332 = vrot.slane %v326, 4
    %v335 = vrot.slane %v328, 4
    %v337 = vsel %vm53, %v324, %v332
    %v338 = vsel %vm53, %v321, %v335
    %v340 = vsel %vm56, %v322, 0
    %v343 = vsel %vm53, %v330, 0
    %345 = vmatprep.subr.mxu0 0.0
    %346 = vmatpush1.msra.mxu0 %v337
    %347 = vmatprep.subr.mxu0 0.0
    %348 = vmatpush1.msra.mxu0 %v338
    %349 = vmatprep.subr.mxu0 0.0
    %350 = vmatpush1.msra.mxu0 %v343
    %351 = vmatprep.subr.mxu0 0.0
    %352 = vmatpush1.msra.mxu0 0.0
    %353 = vmatprep.subr.mxu0 0.0
    %354 = vmatpush1.msra.mxu0 0.0
    %355 = vmatprep.subr.mxu0 0.0
    %356 = vmatpush1.msra.mxu0 0.0
    %357 = vmatprep.subr.mxu0 0.0
    %358 = vmatpush1.msra.mxu0 0.0
    %359 = vmatprep.subr.mxu0 0.0
    %360 = vmatpush1.msra.mxu0 0.0
    %361 = vmatprep.subr.mxu0 0.0
    %362 = vmatpush1.msra.mxu0 0.0
    %363 = vmatprep.subr.mxu0 0.0
    %364 = vmatpush1.msra.mxu0 0.0
    %365 = vmatprep.subr.mxu0 0.0
    %366 = vmatpush1.msra.mxu0 0.0
    %367 = vmatprep.subr.mxu0 0.0
    %368 = vmatpush1.msra.mxu0 0.0
    %369 = vmatprep.subr.mxu0 0.0
    %370 = vmatpush1.msra.mxu0 0.0
    %371 = vmatprep.subr.mxu0 0.0
    %372 = vmatpush1.msra.mxu0 0.0
    %373 = vmatprep.subr.mxu0 0.0
    %374 = vmatpush1.msra.mxu0 0.0
    %375 = vmatprep.subr.mxu0 0.0
    %376 = vmatpush1.msra.mxu0 0.0
    %377 = vmatprep.subr.mxu0 0.0
    %378 = vmatpush1.msra.mxu0 0.0
    %379 = vmatprep.subr.mxu0 0.0
    %380 = vmatpush1.msra.mxu0 0.0
    %381 = vmatprep.subr.mxu0 0.0
    %382 = vmatpush1.msra.mxu0 0.0
    %383 = vmatprep.subr.mxu0 0.0
    %384 = vmatpush1.msra.mxu0 0.0
    %385 = vmatprep.subr.mxu0 0.0
    %386 = vmatpush1.msra.mxu0 0.0
    %387 = vmatprep.subr.mxu0 0.0
    %388 = vmatpush1.msra.mxu0 0.0
    %389 = vmatprep.subr.mxu0 0.0
    %390 = vmatpush1.msra.mxu0 0.0
    %391 = vmatprep.subr.mxu0 0.0
    %392 = vmatpush1.msra.mxu0 0.0
    %393 = vmatprep.subr.mxu0 0.0
    %394 = vmatpush1.msra.mxu0 0.0
    %395 = vmatprep.subr.mxu0 0.0
    %396 = vmatpush1.msra.mxu0 0.0
    %397 = vmatprep.subr.mxu0 0.0
    %398 = vmatpush1.msra.mxu0 0.0
    %399 = vmatprep.subr.mxu0 0.0
    %400 = vmatpush1.msra.mxu0 0.0
    %401 = vmatprep.subr.mxu0 0.0
    %402 = vmatpush1.msra.mxu0 0.0
    %403 = vmatprep.subr.mxu0 0.0
    %404 = vmatpush1.msra.mxu0 0.0
    %405 = vmatprep.subr.mxu0 0.0
    %406 = vmatpush1.msra.mxu0 0.0
    %407 = vmatprep.subr.mxu0 0.0
    %408 = vmatpush1.msra.mxu0 0.0
    %409 = vmatprep.mubr.f32.mxu0 0.0
    %410 = vmatmul.mubr.f32.gmra.mrb[0].mxu0 %v340
    %v411 = vpop.f32.mrb[0].mxu0
    %v412 = vadd.f32 0.0, %v411
    %v413 = vpop.f32.mrb[0].mxu0
    %414 = vdwg.mxu0
    %v415 = vmul.f32 %v412, %v136
    %v416 = vadd.f32 %v415, %v141
    %v417 = vmax.f32 %v416, 0.0
    %v418 = vsel %vm36, %v417, 0.0
    %v419 = vld [vmem:[#allocation2] sm:$0xff]
    %420 = vrot.lane.b32.xlu0 %v418, 2
    %v421 = vpop.permute.xlu0 %420
    %422 = vrot.lane.b32.xlu0 %v418, 1
    %v423 = vpop.permute.xlu0 %422
    %424 = vrot.lane.b32.xlu0 %v418, 127
    %v425 = vpop.permute.xlu0 %424
    %426 = vrot.lane.b32.xlu0 %v418, 126
    %v427 = vpop.permute.xlu0 %426
    %v429 = vsel %vm155, %v419, 0
    %431 = vmatprep.subr.mxu0 0.0
    %432 = vmatpush1.msra.mxu0 %v421
    %433 = vmatprep.subr.mxu0 0.0
    %434 = vmatpush1.msra.mxu0 %v423
    %435 = vmatprep.subr.mxu0 0.0
    %436 = vmatpush1.msra.mxu0 %v418
    %437 = vmatprep.subr.mxu0 0.0
    %438 = vmatpush1.msra.mxu0 %v425
    %439 = vmatprep.subr.mxu0 0.0
    %440 = vmatpush1.msra.mxu0 %v427
    %441 = vmatprep.subr.mxu0 0.0
    %442 = vmatpush1.msra.mxu0 0.0
    %443 = vmatprep.subr.mxu0 0.0
    %444 = vmatpush1.msra.mxu0 0.0
    %445 = vmatprep.subr.mxu0 0.0
    %446 = vmatpush1.msra.mxu0 0.0
    %447 = vmatprep.subr.mxu0 0.0
    %448 = vmatpush1.msra.mxu0 0.0
    %449 = vmatprep.subr.mxu0 0.0
    %450 = vmatpush1.msra.mxu0 0.0
    %451 = vmatprep.subr.mxu0 0.0
    %452 = vmatpush1.msra.mxu0 0.0
    %453 = vmatprep.subr.mxu0 0.0
    %454 = vmatpush1.msra.mxu0 0.0
    %455 = vmatprep.subr.mxu0 0.0
    %456 = vmatpush1.msra.mxu0 0.0
    %457 = vmatprep.subr.mxu0 0.0
    %458 = vmatpush1.msra.mxu0 0.0
    %459 = vmatprep.subr.mxu0 0.0
    %460 = vmatpush1.msra.mxu0 0.0
    %461 = vmatprep.subr.mxu0 0.0
    %462 = vmatpush1.msra.mxu0 0.0
    %463 = vmatprep.subr.mxu0 0.0
    %464 = vmatpush1.msra.mxu0 0.0
    %465 = vmatprep.subr.mxu0 0.0
    %466 = vmatpush1.msra.mxu0 0.0
    %467 = vmatprep.subr.mxu0 0.0
    %468 = vmatpush1.msra.mxu0 0.0
    %469 = vmatprep.subr.mxu0 0.0
    %470 = vmatpush1.msra.mxu0 0.0
    %471 = vmatprep.subr.mxu0 0.0
    %472 = vmatpush1.msra.mxu0 0.0
    %473 = vmatprep.subr.mxu0 0.0
    %474 = vmatpush1.msra.mxu0 0.0
    %475 = vmatprep.subr.mxu0 0.0
    %476 = vmatpush1.msra.mxu0 0.0
    %477 = vmatprep.subr.mxu0 0.0
    %478 = vmatpush1.msra.mxu0 0.0
    %479 = vmatprep.subr.mxu0 0.0
    %480 = vmatpush1.msra.mxu0 0.0
    %481 = vmatprep.subr.mxu0 0.0
    %482 = vmatpush1.msra.mxu0 0.0
    %483 = vmatprep.subr.mxu0 0.0
    %484 = vmatpush1.msra.mxu0 0.0
    %485 = vmatprep.subr.mxu0 0.0
    %486 = vmatpush1.msra.mxu0 0.0
    %487 = vmatprep.subr.mxu0 0.0
    %488 = vmatpush1.msra.mxu0 0.0
    %489 = vmatprep.subr.mxu0 0.0
    %490 = vmatpush1.msra.mxu0 0.0
    %491 = vmatprep.subr.mxu0 0.0
    %492 = vmatpush1.msra.mxu0 0.0
    %493 = vmatprep.subr.mxu0 0.0
    %494 = vmatpush1.msra.mxu0 0.0
    %495 = vmatprep.mubr.f32.mxu0 0.0
    %496 = vmatmul.mubr.f32.gmra.mrb[0].mxu0 %v429
    %v497 = vpop.f32.mrb[0].mxu0
    %v498 = vadd.f32 0.0, %v497
    %v499 = vpop.f32.mrb[0].mxu0
    %500 = vdwg.mxu0
    %v501 = vmul.f32 %v498, %v231
    %v502 = vadd.f32 %v501, %v236
    %v503 = vld [vmem:[%s3] sm:$0xff]
    %v505 = vsel %vm240, %v503, 0
    %v508 = vsel %vm53, %v321, 0
    %510 = vmatprep.subr.mxu0 0.0
    %511 = vmatpush1.msra.mxu0 %v508
    %512 = vmatprep.subr.mxu0 0.0
    %513 = vmatpush1.msra.mxu0 0.0
    %514 = vmatprep.subr.mxu0 0.0
    %515 = vmatpush1.msra.mxu0 0.0
    %516 = vmatprep.subr.mxu0 0.0
    %517 = vmatpush1.msra.mxu0 0.0
    %518 = vmatprep.subr.mxu0 0.0
    %519 = vmatpush1.msra.mxu0 0.0
    %520 = vmatprep.subr.mxu0 0.0
    %521 = vmatpush1.msra.mxu0 0.0
    %522 = vmatprep.subr.mxu0 0.0
    %523 = vmatpush1.msra.mxu0 0.0
    %524 = vmatprep.subr.mxu0 0.0
    %525 = vmatpush1.msra.mxu0 0.0
    %526 = vmatprep.subr.mxu0 0.0
    %527 = vmatpush1.msra.mxu0 0.0
    %528 = vmatprep.subr.mxu0 0.0
    %529 = vmatpush1.msra.mxu0 0.0
    %530 = vmatprep.subr.mxu0 0.0
    %531 = vmatpush1.msra.mxu0 0.0
    %532 = vmatprep.subr.mxu0 0.0
    %533 = vmatpush1.msra.mxu0 0.0
    %534 = vmatprep.subr.mxu0 0.0
    %535 = vmatpush1.msra.mxu0 0.0
    %536 = vmatprep.subr.mxu0 0.0
    %537 = vmatpush1.msra.mxu0 0.0
    %538 = vmatprep.subr.mxu0 0.0
    %539 = vmatpush1.msra.mxu0 0.0
    %540 = vmatprep.subr.mxu0 0.0
    %541 = vmatpush1.msra.mxu0 0.0
    %542 = vmatprep.subr.mxu0 0.0
    %543 = vmatpush1.msra.mxu0 0.0
    %544 = vmatprep.subr.mxu0 0.0
    %545 = vmatpush1.msra.mxu0 0.0
    %546 = vmatprep.subr.mxu0 0.0
    %547 = vmatpush1.msra.mxu0 0.0
    %548 = vmatprep.subr.mxu0 0.0
    %549 = vmatpush1.msra.mxu0 0.0
    %550 = vmatprep.subr.mxu0 0.0
    %551 = vmatpush1.msra.mxu0 0.0
    %552 = vmatprep.subr.mxu0 0.0
    %553 = vmatpush1.msra.mxu0 0.0
    %554 = vmatprep.subr.mxu0 0.0
    %555 = vmatpush1.msra.mxu0 0.0
    %556 = vmatprep.subr.mxu0 0.0
    %557 = vmatpush1.msra.mxu0 0.0
    %558 = vmatprep.subr.mxu0 0.0
    %559 = vmatpush1.msra.mxu0 0.0
    %560 = vmatprep.subr.mxu0 0.0
    %561 = vmatpush1.msra.mxu0 0.0
    %562 = vmatprep.subr.mxu0 0.0
    %563 = vmatpush1.msra.mxu0 0.0
    %564 = vmatprep.subr.mxu0 0.0
    %565 = vmatpush1.msra.mxu0 0.0
    %566 = vmatprep.subr.mxu0 0.0
    %567 = vmatpush1.msra.mxu0 0.0
    %568 = vmatprep.subr.mxu0 0.0
    %569 = vmatpush1.msra.mxu0 0.0
    %570 = vmatprep.subr.mxu0 0.0
    %571 = vmatpush1.msra.mxu0 0.0
    %572 = vmatprep.subr.mxu0 0.0
    %573 = vmatpush1.msra.mxu0 0.0
    %574 = vmatprep.mubr.f32.mxu0 0.0
    %575 = vmatmul.mubr.f32.gmra.mrb[0].mxu0 %v505
    %v576 = vpop.f32.mrb[0].mxu0
    %v577 = vadd.f32 0.0, %v576
    %v578 = vpop.f32.mrb[0].mxu0
    %579 = vdwg.mxu0
    %v580 = vadd.f32 %v502, %v577
    %v581 = vmax.f32 %v580, 0.0
    %s582 = scalar_lea.vmem [#allocation5], 8
    %583 = vst [vmem:[%s582] sm:$0xff] %v581
    // Predicated region
    $region26: #{_lambda_.1} parent=1 // pred_check
      _
    $region27: #{_lambda_.1} parent=1 // pred_check_branch
      %585 = sbr.rel (0) target = $region29
    $region28: #{_lambda_.1} parent=1 // pred_region
      %s587 = ssub.s32 256, 256
      %588 = vsyncadd [#allocation4], %s587
      %s589 = sshll.u32 [#allocation5], 4
      %s590 = int_to_ptr.vmem [resolvable:$true] %s589
      %595 = dma.vmem_to_hbm [thread:$0]  %s590, 256, %s5, [#allocation4], 128, 128, 8
    $region29: #{_lambda_.1} parent=1 // pred_fallthru
      _
    // Predicated region
    $region30: #{_lambda_.1} parent=1 // pred_check
      _
    $region31: #{_lambda_.1} parent=1 // pred_check_branch
      %597 = sbr.rel (0) target = $region33
    $region32: #{_lambda_.1} parent=1 // pred_region
      %598 = dma.done [#allocation4], 256
    $region33: #{_lambda_.1} parent=1 // pred_fallthru
      _
    %599 = vsyncpa [#allocation3], 1
    %600 = vsyncpa [#allocation4], 1

</llo_original>
